<compile_context>
chip_gen: v7x
topology: tpu7x:2x2x1
jax: 0.10.0
libtpu: 0.0.40
codegen_flags: <defaults>
</compile_context>

<pallas_src>
import jax
import jax.numpy as jnp
from jax.experimental import pallas as pl
from jax.experimental.pallas import tpu as pltpu

# Module hyper-parameters (SMTLayer(input_size, output_size, theory, ...)).
INPUT_SIZE = 128                      # solver-input variables (mask == 1)
OUTPUT_SIZE = 64                      # solver-output variables (mask == 0)
N_VARS = INPUT_SIZE + OUTPUT_SIZE     # total SMT variables per example
OUT_PADDED = 128                      # lane-dense padded output width
MAX_TILE_B = 512                      # upper bound on batch rows per grid step
BATCH = 16                            # small example batch


def _round_up(n: int, m: int) -> int:
    return ((n + m - 1) // m) * m


def _choose_tile_b(batch: int) -> int:
    """Pick the batch tile: as large as possible (overhead-bound kernel),
    capped at 512, multiple of 16 (bf16 sublane packing), and -- when the
    batch is big enough -- split into >= 2 grid steps so v7x's two
    TensorCores both get work (never shrinking a step below 256 rows)."""
    tile = min(MAX_TILE_B, _round_up(batch, 16))
    if pl.cdiv(batch, tile) < 2:
        half = _round_up(pl.cdiv(batch, 2), 16)
        if half >= 256:
            tile = half
    return tile


def smt_forward_kernel(x_ref, w_ref, y_ref):
    """One grid step: TILE_B batch rows against the full (resident) theory.

    x_ref : [TILE_B, INPUT_SIZE]      float32 input-variable scores (VMEM)
    w_ref : [INPUT_SIZE, OUT_PADDED]  bfloat16 {0,1} theory incidence matrix
                                      (zero-padded columns), resident in VMEM
    y_ref : [TILE_B, OUT_PADDED]      bfloat16 +/-1 solver output (lane-dense)
    """
    # _float_to_bool: x < 0 -> Not(var), else var  =>  literal truth value.
    # not(x < 0) matches PyTorch exactly, including NaN (NaN -> positive lit).
    b = jnp.logical_not(x_ref[...] < 0.0).astype(jnp.bfloat16)  # [TILE_B, K]
    # out_j = Xor_{i in S_j} in_i  ==  (sum_i b_i * W_ij) mod 2.
    # bf16 {0,1} operands on the MXU with f32 accumulation: integer-valued
    # sums <= 128, so exact on all generations.
    p = jnp.dot(b, w_ref[...], preferred_element_type=jnp.float32)
    parity = p.astype(jnp.int32) & 1                             # mod 2 (VPU AND)
    # y = 2 * (bool_output - 0.5)  ->  +/-1, exact in bf16.
    y_ref[...] = (2 * parity - 1).astype(y_ref.dtype)


def smt_layer_forward(x, w):
    """Pallas wrapper mirroring SMTLayer.forward(x) with the default mask.

    x : [B, N_VARS]  float32 variable scores; the first INPUT_SIZE columns are
        the solver inputs (default_mask == 1), the rest are solver outputs.
    w : [INPUT_SIZE, OUTPUT_SIZE]  float32 {0,1} parity-theory matrix.
    Returns y : [B, OUTPUT_SIZE] float32 in {-1, +1}.
    """
    B, n_vars = x.shape
    assert n_vars == N_VARS, "mask and input shapes do not match"

    # Zero-pad W columns to a lane-dense 128-wide output; padded parities are 0
    # (y == -1) and are sliced away below. Cast to bf16 for the MXU.
    w_bf16 = jnp.pad(
        w, ((0, 0), (0, OUT_PADDED - OUTPUT_SIZE))).astype(jnp.bfloat16)

    tile_b = _choose_tile_b(B)
    nb = pl.cdiv(B, tile_b)

    y_padded = pl.pallas_call(
        smt_forward_kernel,
        out_shape=jax.ShapeDtypeStruct((B, OUT_PADDED), jnp.bfloat16),
        grid=(nb,),
        in_specs=[
            # Full x is passed; this BlockSpec DMAs only the first INPUT_SIZE
            # columns (the solver inputs) of each TILE_B slab -- no wrapper
            # slice copy, no wasted HBM traffic for the output columns.
            pl.BlockSpec((tile_b, INPUT_SIZE), lambda i: (i, 0)),
            # W: constant index_map -> copied once, resident across all steps.
            pl.BlockSpec((INPUT_SIZE, OUT_PADDED), lambda i: (0, 0)),
        ],
        out_specs=pl.BlockSpec((tile_b, OUT_PADDED), lambda i: (i, 0)),
        compiler_params=pltpu.CompilerParams(
            # Independent batch tiles -> megacore-shardable on v7x.
            dimension_semantics=("parallel",)),
    )(x, w_bf16)

    return y_padded[:, :OUTPUT_SIZE].astype(jnp.float32)


def smt_layer_reference(x, w):
    """Pure-JAX reference for the same synthetic parity theory."""
    b = jnp.logical_not(x[:, :INPUT_SIZE] < 0.0).astype(jnp.float32)
    parity = jnp.mod(b @ w, 2.0)
    return 2.0 * parity - 1.0


if __name__ == "__main__":
    key = jax.random.PRNGKey(0)
    kx, kw = jax.random.split(key)

    # Batch of variable scores (pre-activations feeding the SMT layer).
    x = jax.random.normal(kx, (BATCH, N_VARS), dtype=jnp.float32)

    # Deterministic synthetic theory: out_j == Xor over inputs selected by W.
    w = jax.random.bernoulli(
        kw, p=0.5, shape=(INPUT_SIZE, OUTPUT_SIZE)).astype(jnp.float32)

    y = smt_layer_forward(x, w)
    y = jax.block_until_ready(y)

    y_ref = smt_layer_reference(x, w)
    assert y.shape == (BATCH, OUTPUT_SIZE)
    assert bool(jnp.all(jnp.abs(y) == 1.0))          # outputs are +/-1
    assert bool(jnp.allclose(y, y_ref))

    print("KERNEL_OK")
</pallas_src>

<mosaic_0001>
module attributes {stable_mosaic.version = 11 : i64} {
  func.func @smt_forward_kernel(%arg0: i32, %arg1: memref<16x128xf32, #tpu.memory_space<vmem>>, %arg2: memref<128x128xbf16, #tpu.memory_space<vmem>>, %arg3: memref<16x128xbf16, #tpu.memory_space<vmem>>) attributes {dimension_semantics = [#tpu.dimension_semantics<parallel>], iteration_bounds = array<i64: 1>, scalar_prefetch = 0 : i64, scratch_operands = 0 : i64, tpu.core_type = #tpu.core_type<tc>, window_params = [{transform_indices = @transform_0, window_bounds = array<i64: 16, 128>}, {pipeline_mode = #tpu.pipeline_mode<synchronous>, transform_indices = @transform_1, window_bounds = array<i64: 128, 128>}, {transform_indices = @transform_2, window_bounds = array<i64: 16, 128>}]} {
    %c0 = arith.constant 0 : index
    %c0_0 = arith.constant 0 : index
    %0 = vector.load %arg1[%c0, %c0_0] : memref<16x128xf32, #tpu.memory_space<vmem>>, vector<16x128xf32>
    %cst = arith.constant 0.000000e+00 : f32
    %1 = vector.broadcast %cst : f32 to vector<16x128xf32>
    %2 = arith.cmpf olt, %0, %1 : vector<16x128xf32>
    %cst_1 = arith.constant dense<true> : vector<16x128xi1>
    %3 = arith.xori %2, %cst_1 : vector<16x128xi1>
    %4 = arith.extui %3 : vector<16x128xi1> to vector<16x128xi32>
    %5 = arith.sitofp %4 : vector<16x128xi32> to vector<16x128xf32>
    %6 = arith.truncf %5 : vector<16x128xf32> to vector<16x128xbf16>
    %c0_2 = arith.constant 0 : index
    %c0_3 = arith.constant 0 : index
    %7 = vector.load %arg2[%c0_2, %c0_3] : memref<128x128xbf16, #tpu.memory_space<vmem>>, vector<128x128xbf16>
    %cst_4 = arith.constant dense<0.000000e+00> : vector<16x128xf32>
    %8 = tpu.matmul %6, %7, %cst_4 {dimension_numbers = #tpu.dot_dimension_numbers<[1], [0], [0], [1], [0, 0, 1, 1], [], []>} : vector<16x128xbf16>, vector<128x128xbf16>, vector<16x128xf32> -> vector<16x128xf32>
    %9 = arith.fptosi %8 : vector<16x128xf32> to vector<16x128xi32>
    %c1_i32 = arith.constant 1 : i32
    %10 = vector.broadcast %c1_i32 : i32 to vector<16x128xi32>
    %11 = arith.andi %9, %10 : vector<16x128xi32>
    %c2_i32 = arith.constant 2 : i32
    %12 = vector.broadcast %c2_i32 : i32 to vector<16x128xi32>
    %13 = arith.muli %12, %11 : vector<16x128xi32>
    %c1_i32_5 = arith.constant 1 : i32
    %14 = vector.broadcast %c1_i32_5 : i32 to vector<16x128xi32>
    %15 = arith.subi %13, %14 : vector<16x128xi32>
    %16 = arith.sitofp %15 : vector<16x128xi32> to vector<16x128xbf16>
    %c0_6 = arith.constant 0 : index
    %c0_7 = arith.constant 0 : index
    %17 = vector.load %arg3[%c0_6, %c0_7] : memref<16x128xbf16, #tpu.memory_space<vmem>>, vector<16x128xbf16>
    tpu.vector_store %arg3[%c0_6, %c0_7], %16 {strides = array<i32>} : memref<16x128xbf16, #tpu.memory_space<vmem>>, vector<16x128xbf16>,
    return
  }
  func.func @transform_0(%arg0: i32) -> (i32, i32) {
    %c0_i32 = arith.constant 0 : i32
    %c0_i32_0 = arith.constant 0 : i32
    return %arg0, %c0_i32 : i32, i32
  }
  func.func @transform_1(%arg0: i32) -> (i32, i32) {
    %c0_i32 = arith.constant 0 : i32
    %c0_i32_0 = arith.constant 0 : i32
    %c0_i32_1 = arith.constant 0 : i32
    return %c0_i32, %c0_i32_0 : i32, i32
  }
  func.func @transform_2(%arg0: i32) -> (i32, i32) {
    %c0_i32 = arith.constant 0 : i32
    %c0_i32_0 = arith.constant 0 : i32
    return %arg0, %c0_i32 : i32, i32
  }
}

</mosaic_0001>

<llo_original>
// kernel: tpu_custom_call.1
$region0: #{tpu_custom_call.1}
  #allocation0 [shape = 'u32[]', space=smem, size = 0x4, offset = 0x4, fixed_abs, tag = 'smem constant byte address 0x4 - core index']
  #allocation1 [shape = 'u32[144,128]{1,0:T(1,128)}', space=vmem, size = 0x12000, scoped, tag = 'internal scratch']
  %s0 = inlined_call_operand.hbm [shape: f32[16,192], index: 0, kind: input, shape index: {}]
  %s1 = inlined_call_operand.hbm [shape: bf16[128,128], index: 1, kind: input, shape index: {}]
  %s2 = inlined_call_operand.hbm [shape: bf16[16,128], index: 2, kind: output, shape index: {}]
  %s3 = sld [smem:[#allocation0]]
  $region26: #{tpu_custom_call.1} parent=0
    _
  %s5 = ssub.s32 1, %s3
  %s6 = scalar_select 0, %s5, %s3
  $region1: #{tpu_custom_call.1} parent=0
    #allocation2 [shape = 'u8[8192]{0}', space=vmem, size = 0x2000, scoped, tag = 'input window, operand 0, single buffered']
    #allocation3 [shape = 's32[1]{0}', space=sflag, size = 0x4, scoped, tag = 'scoped memory for tpu_custom_call.1']
    #allocation4 [shape = 's32[1]{0}', space=sflag, size = 0x4, scoped, tag = 'scoped memory for tpu_custom_call.1']
    #allocation5 [shape = 'u8[32768]{0}', space=vmem, size = 0x8000, scoped, tag = 'input window, operand 1, single buffered']
    #allocation6 [shape = 's32[1]{0}', space=sflag, size = 0x4, scoped, tag = 'scoped memory for tpu_custom_call.1']
    #allocation7 [shape = 'u8[4096]{0}', space=vmem, size = 0x1000, scoped, tag = 'output window, operand 0, single buffered']
    %7 = vsyncpa [#allocation3], 0
    %8 = vsyncpa [#allocation6], 0
    %9 = vsyncpa [#allocation4], 0
    // Predicated region
    $region2: #{tpu_custom_call.1} parent=1 // pred_check
      _
    $region3: #{tpu_custom_call.1} parent=1 // pred_check_branch
      %11 = sbr.rel (0) target = $region5
    $region4: #{tpu_custom_call.1} parent=1 // pred_region
      %s13 = ssub.s32 256, 256
      %14 = vsyncadd [#allocation3], %s13
      %s15 = sshll.u32 [#allocation2], 4
      %s16 = int_to_ptr.vmem [resolvable:$true] %s15
      %21 = dma.hbm_to_vmem [thread:$0]  %s0, 256, %s16, [#allocation3], 256, 128, 8
    $region5: #{tpu_custom_call.1} parent=1 // pred_fallthru
      _
    // Predicated region
    $region6: #{tpu_custom_call.1} parent=1 // pred_check
      _
    $region7: #{tpu_custom_call.1} parent=1 // pred_check_branch
      %23 = sbr.rel (0) target = $region9
    $region8: #{tpu_custom_call.1} parent=1 // pred_region
      %s25 = ssub.s32 1024, 1024
      %26 = vsyncadd [#allocation6], %s25
      %s27 = sshll.u32 [#allocation5], 4
      %s28 = int_to_ptr.vmem [resolvable:$true] %s27
      %33 = dma.hbm_to_vmem [thread:$0]  %s1, 1024, %s28, [#allocation6], 64, 64, 4
    $region9: #{tpu_custom_call.1} parent=1 // pred_fallthru
      _
    // Predicated region
    $region10: #{tpu_custom_call.1} parent=1 // pred_check
      _
    $region11: #{tpu_custom_call.1} parent=1 // pred_check_branch
      %35 = sbr.rel (0) target = $region13
    $region12: #{tpu_custom_call.1} parent=1 // pred_region
      %36 = dma.done [#allocation3], 256
    $region13: #{tpu_custom_call.1} parent=1 // pred_fallthru
      _
    // Predicated region
    $region14: #{tpu_custom_call.1} parent=1 // pred_check
      _
    $region15: #{tpu_custom_call.1} parent=1 // pred_check_branch
      %38 = sbr.rel (0) target = $region17
    $region16: #{tpu_custom_call.1} parent=1 // pred_region
      %39 = dma.done [#allocation6], 1024
    $region17: #{tpu_custom_call.1} parent=1 // pred_fallthru
      _
    %v41 = vld [vmem:[#allocation2] sm:$0xff]
    %v42 = vld [vmem:[#allocation2 + $0x8] sm:$0xff]
    %vm43 = vcmp.lt.f32.partialorder %v41, 0.0
    %vm44 = vcmp.lt.f32.partialorder %v42, 0.0
    %vm45 = vmxor %vm43, 1
    %vm46 = vmxor %vm44, 1
    %v47 = vsel %vm45, 1, 0
    %v48 = vsel %vm46, 1, 0
    %v49 = vcvt.s32.f32 %v47
    %v50 = vcvt.s32.f32 %v48
    %v51 = vpack.c.bf16 %v50, %v49
    %v52 = vld [vmem:[#allocation5] sm:$0xf]
    %v53 = vld [vmem:[#allocation5 + $0x4] sm:$0xf]
    %v54 = vld [vmem:[#allocation5 + $0x8] sm:$0xf]
    %v55 = vld [vmem:[#allocation5 + $0xc] sm:$0xf]
    %v56 = vld [vmem:[#allocation5 + $0x10] sm:$0xf]
    %v57 = vld [vmem:[#allocation5 + $0x14] sm:$0xf]
    %v58 = vld [vmem:[#allocation5 + $0x18] sm:$0xf]
    %v59 = vld [vmem:[#allocation5 + $0x1c] sm:$0xf]
    %v60 = vld [vmem:[#allocation5 + $0x20] sm:$0xf]
    %v61 = vld [vmem:[#allocation5 + $0x24] sm:$0xf]
    %v62 = vld [vmem:[#allocation5 + $0x28] sm:$0xf]
    %v63 = vld [vmem:[#allocation5 + $0x2c] sm:$0xf]
    %v64 = vld [vmem:[#allocation5 + $0x30] sm:$0xf]
    %v65 = vld [vmem:[#allocation5 + $0x34] sm:$0xf]
    %v66 = vld [vmem:[#allocation5 + $0x38] sm:$0xf]
    %v67 = vld [vmem:[#allocation5 + $0x3c] sm:$0xf]
    %v84 = vunpack.c.l.b16 %v52
    %v85 = vunpack.c.l.b16 %v53
    %v86 = vunpack.c.l.b16 %v54
    %v87 = vunpack.c.l.b16 %v55
    %v88 = vunpack.c.l.b16 %v56
    %v89 = vunpack.c.l.b16 %v57
    %v90 = vunpack.c.l.b16 %v58
    %v91 = vunpack.c.l.b16 %v59
    %v92 = vunpack.c.l.b16 %v60
    %v93 = vunpack.c.l.b16 %v61
    %v94 = vunpack.c.l.b16 %v62
    %v95 = vunpack.c.l.b16 %v63
    %v96 = vunpack.c.l.b16 %v64
    %v97 = vunpack.c.l.b16 %v65
    %v98 = vunpack.c.l.b16 %v66
    %v99 = vunpack.c.l.b16 %v67
    %v100 = vpack.c.b16 %v85, %v84
    %v101 = vpack.c.b16 %v87, %v86
    %v102 = vpack.c.b16 %v89, %v88
    %v103 = vpack.c.b16 %v91, %v90
    %v104 = vpack.c.b16 %v93, %v92
    %v105 = vpack.c.b16 %v95, %v94
    %v106 = vpack.c.b16 %v97, %v96
    %v107 = vpack.c.b16 %v99, %v98
    %116 = vmatprep.subr.bf16.mxu0 0
    %117 = vmatpush1.bf16.msra.mxu0 %v100
    %118 = vmatprep.subr.bf16.mxu0 0
    %119 = vmatpush1.bf16.msra.mxu0 %v101
    %120 = vmatprep.subr.bf16.mxu0 0
    %121 = vmatpush1.bf16.msra.mxu0 %v102
    %122 = vmatprep.subr.bf16.mxu0 0
    %123 = vmatpush1.bf16.msra.mxu0 %v103
    %124 = vmatprep.subr.bf16.mxu0 0
    %125 = vmatpush1.bf16.msra.mxu0 %v104
    %126 = vmatprep.subr.bf16.mxu0 0
    %127 = vmatpush1.bf16.msra.mxu0 %v105
    %128 = vmatprep.subr.bf16.mxu0 0
    %129 = vmatpush1.bf16.msra.mxu0 %v106
    %130 = vmatprep.subr.bf16.mxu0 0
    %131 = vmatpush1.bf16.msra.mxu0 %v107
    %132 = vmatprep.subr.bf16.mxu0 0
    %133 = vmatpush1.bf16.msra.mxu0 0
    %134 = vmatprep.subr.bf16.mxu0 0
    %135 = vmatpush1.bf16.msra.mxu0 0
    %136 = vmatprep.subr.bf16.mxu0 0
    %137 = vmatpush1.bf16.msra.mxu0 0
    %138 = vmatprep.subr.bf16.mxu0 0
    %139 = vmatpush1.bf16.msra.mxu0 0
    %140 = vmatprep.subr.bf16.mxu0 0
    %141 = vmatpush1.bf16.msra.mxu0 0
    %142 = vmatprep.subr.bf16.mxu0 0
    %143 = vmatpush1.bf16.msra.mxu0 0
    %144 = vmatprep.subr.bf16.mxu0 0
    %145 = vmatpush1.bf16.msra.mxu0 0
    %146 = vmatprep.subr.bf16.mxu0 0
    %147 = vmatpush1.bf16.msra.mxu0 0
    %148 = vmatprep.mubr.bf16.mxu0 0
    %149 = vmatmul.mubr.bf16.gmra.mrb[0].mxu0 %v51
    %v150 = vpop.f32.mrb[0].mxu0
    %v151 = vadd.f32 0.0, %v150
    %v152 = vpop.f32.mrb[0].mxu0
    %v153 = vpop.f32.mrb[0].mxu0
    %v154 = vadd.f32 0.0, %v153
    %v155 = vpop.f32.mrb[0].mxu0
    %156 = vdwg.mxu0
    %v157 = vcvt.f32.s32.to.zero.pseudo %v151
    %v158 = vcvt.f32.s32.to.zero.pseudo %v154
    %v159 = vand.u32 %v157, 1
    %v160 = vand.u32 %v158, 1
    %v161 = vmul.u32 %v159, 2
    %v162 = vmul.u32 %v160, 2
    %v163 = vsub.s32 %v161, 1
    %v164 = vsub.s32 %v162, 1
    %v165 = vcvt.s32.f32 %v163
    %v166 = vcvt.s32.f32 %v164
    %v167 = vpack.c.bf16 %v166, %v165
    %v169 = vunpack.c.l.b16 %v167
    %v170 = vunpack.c.h.b16 %v167
    %v171 = vpack.c.b16 %v169, %v169
    %v172 = vpack.c.b16 %v170, %v170
    %175 = vst [vmem:[#allocation7] sm:$0xf] %v171
    %176 = vst [vmem:[#allocation7 + $0x4] sm:$0xf] %v172
    // Predicated region
    $region18: #{tpu_custom_call.1} parent=1 // pred_check
      _
    $region19: #{tpu_custom_call.1} parent=1 // pred_check_branch
      %178 = sbr.rel (0) target = $region21
    $region20: #{tpu_custom_call.1} parent=1 // pred_region
      %s180 = ssub.s32 128, 128
      %181 = vsyncadd [#allocation4], %s180
      %s182 = sshll.u32 [#allocation7], 4
      %s183 = int_to_ptr.vmem [resolvable:$true] %s182
      %188 = dma.vmem_to_hbm [thread:$0]  %s183, 128, %s2, [#allocation4], 64, 64, 4
    $region21: #{tpu_custom_call.1} parent=1 // pred_fallthru
      _
    // Predicated region
    $region22: #{tpu_custom_call.1} parent=1 // pred_check
      _
    $region23: #{tpu_custom_call.1} parent=1 // pred_check_branch
      %190 = sbr.rel (0) target = $region25
    $region24: #{tpu_custom_call.1} parent=1 // pred_region
      %191 = dma.done [#allocation4], 128
    $region25: #{tpu_custom_call.1} parent=1 // pred_fallthru
      _
    %192 = vsyncpa [#allocation3], 1
    %193 = vsyncpa [#allocation6], 1
    %194 = vsyncpa [#allocation4], 1

</llo_original>
